<compile_context>
chip_gen: v5e
topology: v5e:2x2
jax: 0.10.0
libtpu: 0.0.40
codegen_flags: <defaults>
</compile_context>

<pallas_src>
import functools

import jax
import jax.numpy as jnp
import numpy as np
from jax.experimental import pallas as pl
from jax.experimental.pallas import tpu as pltpu

# ----------------------------- config ---------------------------------------
BATCH = 2
T_LEN = 64
CONV_WINDOW = 16
HIDDEN = 32
NLAYERS = 2
NUM_CLASSES = 10

STEM_C = 16      # encoder stem channels
STEM_K = 7       # stem kernel size
STEM_STRIDE = 2
STEM_PAD = 3
STEM_L = (CONV_WINDOW + 2 * STEM_PAD - STEM_K) // STEM_STRIDE + 1   # = 8
STEM_LK = STEM_L * STEM_K                                           # = 56
STEM_LKP = ((STEM_LK + 15) // 16) * 16                              # bf16-tile pad = 64
STEM_LC = STEM_L * STEM_C                                           # = 128


# ------------------------ fused Pallas kernel --------------------------------
def rnn_resnet_kernel(patches_ref, w_ref, b_ref, out_ref, gx_ref, hseq_ref,
                      *, nlayers, seq_len, batch, hidden, lkp, lc):
    H = hidden
    B = batch
    bf16 = jnp.bfloat16

    # static row offsets into the packed bf16 weight slab
    o_w0 = lkp                              # folded (wproj @ wih[0]) block
    o_wih = o_w0 + lc                       # wih for layers 1..nlayers-1
    o_whh = o_wih + (nlayers - 1) * H       # whh for layers 0..nlayers-1
    o_fc = o_whh + nlayers * H              # padded classifier weight

    out_ref[...] = jnp.zeros_like(out_ref)

    # ---- phase 1: encoder (block-diag conv) + pool/proj folded into wih0 ----
    feat = jnp.maximum(
        jnp.dot(patches_ref[...], w_ref[0:lkp, :],
                preferred_element_type=jnp.float32) + b_ref[0:1, :], 0.0)
    gx_ref[...] = (jnp.dot(feat.astype(bf16), w_ref[o_w0:o_w0 + lc, :],
                           preferred_element_type=jnp.float32) + b_ref[1:2, :])

    # ---- phase 2: stacked LSTM, permuted gate order [f, o, i, g] -------------
    h = None
    for layer in range(nlayers):                        # static unroll (NL=2)
        if layer > 0:
            # next layer's input projection for ALL timesteps in one matmul
            wih_l = w_ref[o_wih + (layer - 1) * H:o_wih + layer * H, :]
            gx_ref[...] = (jnp.dot(hseq_ref[...].astype(bf16), wih_l,
                                   preferred_element_type=jnp.float32)
                           + b_ref[1 + layer:2 + layer, :])
        whh_l = w_ref[o_whh + layer * H:o_whh + (layer + 1) * H, :]   # (H, 4H) bf16

        h = jnp.zeros((B, H), jnp.float32)
        c = jnp.zeros((B, H), jnp.float32)
        for t in range(seq_len):                        # static unroll (S=4)
            gates = (gx_ref[t * B:(t + 1) * B, :]
                     + jnp.dot(h.astype(bf16), whh_l,
                               preferred_element_type=jnp.float32))   # (B, 4H) f32
            # whole-vreg activations on the EUP, then gate extraction
            sig = jax.nn.sigmoid(gates)
            tnh = jnp.tanh(gates)
            # order [f, o, i, g]:  c = f*c + i*g ;  h = o*tanh(c)
            c = sig[:, 0:H] * c + sig[:, 2 * H:3 * H] * tnh[:, 3 * H:4 * H]
            h = sig[:, H:2 * H] * jnp.tanh(c)
            hseq_ref[t * B:(t + 1) * B, :] = h
        # TODO(synk): inter-layer / output nn.Dropout is identity (eval mode).

        out_ref[B + layer * B:B + (layer + 1) * B, 0:H] = h          # h_n
        out_ref[B + layer * B:B + (layer + 1) * B, H:2 * H] = c      # c_n

    # ---- phase 3: final FC on X_R[:, -1, :] (== h of last layer) -------------
    out_ref[0:B, :] = (jnp.dot(h.astype(bf16), w_ref[o_fc:o_fc + H, :],
                               preferred_element_type=jnp.float32)
                       + b_ref[nlayers + 1:nlayers + 2, :])


def rnn_resnet_pallas(patches, wslab, bslab, *, seq_len, batch, hidden, nlayers):
    kern = functools.partial(rnn_resnet_kernel, nlayers=nlayers, seq_len=seq_len,
                             batch=batch, hidden=hidden, lkp=STEM_LKP, lc=STEM_LC)
    vmem = pl.BlockSpec(memory_space=pltpu.MemorySpace.VMEM)
    out_rows = max(8, -(-(batch * (nlayers + 1)) // 8) * 8)
    return pl.pallas_call(
        kern,
        out_shape=jax.ShapeDtypeStruct((out_rows, 4 * hidden), jnp.float32),
        in_specs=[vmem, vmem, vmem],
        out_specs=vmem,
        scratch_shapes=[pltpu.VMEM((seq_len * batch, 4 * hidden), jnp.float32),
                        pltpu.VMEM((seq_len * batch, hidden), jnp.float32)],
    )(patches, wslab, bslab)


# ------------------------------ glue / wrapper --------------------------------
def _im2col(X):
    """X: (B, 1, T) -> time-major flattened bf16 patches (S*B, LKP)."""
    B, _, T = X.shape
    W = CONV_WINDOW
    S = T // W
    xw = X[:, 0, :].reshape(B, S, W)
    xw = jnp.transpose(xw, (1, 0, 2)).reshape(S * B, W)        # time-major windows
    xpad = jnp.pad(xw, ((0, 0), (STEM_PAD, STEM_PAD)))
    idx = (jnp.arange(STEM_L) * STEM_STRIDE)[:, None] + jnp.arange(STEM_K)[None, :]
    patches = xpad[:, idx].reshape(S * B, STEM_LK)             # (S*B, L*K)
    patches = jnp.pad(patches, ((0, 0), (0, STEM_LKP - STEM_LK)))
    return patches.astype(jnp.bfloat16), S


def prepare_kernel_params(p):
    """One-time weight re-layout / folding (outside the kernel hot path)."""
    L, K, C, H, NL, NC = STEM_L, STEM_K, STEM_C, HIDDEN, NLAYERS, NUM_CLASSES
    G = 4 * H
    assert L * C == G, "packed weight slab assumes L*C == 4*H (both 128 here)"

    # gate permutation: PyTorch [i, f, g, o] -> [f, o, i, g]
    perm = np.concatenate([np.arange(H, 2 * H), np.arange(3 * H, 4 * H),
                           np.arange(0, H), np.arange(2 * H, 3 * H)])
    wih_t = jnp.transpose(p["wih"], (0, 2, 1))[:, :, perm]      # (NL, H, 4H)
    whh_t = jnp.transpose(p["whh"], (0, 2, 1))[:, :, perm]      # (NL, H, 4H)
    bias = (p["bih"] + p["bhh"])[:, :, perm]                    # (NL, 1, 4H)

    # block-diagonal conv weight -> per-window conv as one lane-dense matmul
    wconv_blk = jnp.kron(jnp.eye(L, dtype=jnp.float32), p["wconv"])   # (L*K, L*C)
    wconv_blk = jnp.pad(wconv_blk, ((0, STEM_LKP - L * K), (0, 0)))   # bf16-tile align
    bconv_t = jnp.tile(p["bconv"], (1, L))                            # (1, L*C)

    # avg-pool folded into projection, projection folded into layer-0 W_ih
    wproj_t = jnp.tile(p["wproj"], (L, 1)) / float(L)                 # (L*C, H)
    w0 = wproj_t @ wih_t[0]                                           # (L*C, 4H)
    b0 = p["bproj"] @ wih_t[0] + bias[0]                              # (1, 4H)

    # classifier padded to slab width (zero cols NC:4H)
    wfc_pad = jnp.zeros((H, G), jnp.float32).at[:, :NC].set(p["wfc"].T)
    bfc_pad = jnp.zeros((1, G), jnp.float32).at[:, :NC].set(p["bfc"])

    wslab = jnp.concatenate(
        [wconv_blk, w0]
        + [wih_t[l] for l in range(1, NL)]
        + [whh_t[l] for l in range(NL)]
        + [wfc_pad], axis=0).astype(jnp.bfloat16)                     # (320, 128) bf16
    bslab = jnp.concatenate(
        [bconv_t, b0] + [bias[l] for l in range(1, NL)] + [bfc_pad],
        axis=0).astype(jnp.float32)                                   # (NL+2, 128) f32
    return {"wslab": wslab, "bslab": bslab}


@jax.jit
def rnn_resnet_forward(X, kparams):
    patches, S = _im2col(X)
    B = X.shape[0]
    slab = rnn_resnet_pallas(patches, kparams["wslab"], kparams["bslab"],
                             seq_len=S, batch=B, hidden=HIDDEN, nlayers=NLAYERS)
    out = slab[0:B, 0:NUM_CLASSES]
    hc = slab[B:B + NLAYERS * B, :]
    hn = hc[:, 0:HIDDEN].reshape(NLAYERS, B, HIDDEN)
    cn = hc[:, HIDDEN:2 * HIDDEN].reshape(NLAYERS, B, HIDDEN)
    return out, (hn, cn)


# ------------------------------ reference ------------------------------------
def reference_forward(X, p):
    B, _, T = X.shape
    W = CONV_WINDOW
    S = T // W
    xw = X[:, 0, :].reshape(B * S, W)
    xpad = jnp.pad(xw, ((0, 0), (STEM_PAD, STEM_PAD)))
    idx = (jnp.arange(STEM_L) * STEM_STRIDE)[:, None] + jnp.arange(STEM_K)[None, :]
    patches = xpad[:, idx]                                     # (B*S, L, K)

    feat = jnp.maximum(jnp.einsum("nlk,kc->nlc", patches, p["wconv"])
                       + p["bconv"][None], 0.0)
    pooled = feat.mean(axis=1)
    xc = (pooled @ p["wproj"] + p["bproj"]).reshape(B, S, HIDDEN)

    seq = xc
    hs, cs = [], []
    for layer in range(NLAYERS):
        h = jnp.zeros((B, HIDDEN), jnp.float32)
        c = jnp.zeros((B, HIDDEN), jnp.float32)
        outs = []
        for t in range(S):
            x_t = seq[:, t, :]
            gates = (x_t @ p["wih"][layer].T + h @ p["whh"][layer].T
                     + p["bih"][layer] + p["bhh"][layer])
            i = jax.nn.sigmoid(gates[:, :HIDDEN])
            f = jax.nn.sigmoid(gates[:, HIDDEN:2 * HIDDEN])
            g = jnp.tanh(gates[:, 2 * HIDDEN:3 * HIDDEN])
            o = jax.nn.sigmoid(gates[:, 3 * HIDDEN:])
            c = f * c + i * g
            h = o * jnp.tanh(c)
            outs.append(h)
        seq = jnp.stack(outs, axis=1)
        hs.append(h)
        cs.append(c)
    out = seq[:, -1, :] @ p["wfc"].T + p["bfc"]
    return out, (jnp.stack(hs), jnp.stack(cs))


# ------------------------------ params ---------------------------------------
def init_params(key):
    ks = jax.random.split(key, 10)
    H, C, K = HIDDEN, STEM_C, STEM_K
    k_rnn = 1.0 / np.sqrt(H)
    u = lambda kk, shape, b: jax.random.uniform(kk, shape, jnp.float32, -b, b)
    return {
        "wconv": u(ks[0], (K, C), 1.0 / np.sqrt(K)),
        "bconv": u(ks[1], (1, C), 1.0 / np.sqrt(K)),
        "wproj": u(ks[2], (C, H), 1.0 / np.sqrt(C)),
        "bproj": u(ks[3], (1, H), 1.0 / np.sqrt(C)),
        "wih": u(ks[4], (NLAYERS, 4 * H, H), k_rnn),
        "whh": u(ks[5], (NLAYERS, 4 * H, H), k_rnn),
        "bih": u(ks[6], (NLAYERS, 1, 4 * H), k_rnn),
        "bhh": u(ks[7], (NLAYERS, 1, 4 * H), k_rnn),
        "wfc": u(ks[8], (NUM_CLASSES, H), 1.0 / np.sqrt(H)),
        "bfc": u(ks[9], (1, NUM_CLASSES), 1.0 / np.sqrt(H)),
    }


# ------------------------------- main -----------------------------------------
if __name__ == "__main__":
    key = jax.random.PRNGKey(0)
    kx, kp = jax.random.split(key)
    X = jax.random.normal(kx, (BATCH, 1, T_LEN), jnp.float32)   # (B, C=1, T)
    params = init_params(kp)
    kparams = prepare_kernel_params(params)                     # one-time re-layout

    out, (hn, cn) = rnn_resnet_forward(X, kparams)
    jax.block_until_ready(out)

    # f32 oracle (kernel uses single-pass bf16 MXU operands -> ~1e-3..1e-2 error)
    with jax.default_matmul_precision("highest"):
        out_ref, (hn_ref, cn_ref) = reference_forward(X, params)
    np.testing.assert_allclose(np.asarray(out), np.asarray(out_ref),
                               rtol=2e-2, atol=2e-2)
    np.testing.assert_allclose(np.asarray(hn), np.asarray(hn_ref),
                               rtol=2e-2, atol=2e-2)
    np.testing.assert_allclose(np.asarray(cn), np.asarray(cn_ref),
                               rtol=2e-2, atol=2e-2)

    assert out.shape == (BATCH, NUM_CLASSES)
    assert hn.shape == (NLAYERS, BATCH, HIDDEN)
    assert cn.shape == (NLAYERS, BATCH, HIDDEN)
    print("KERNEL_OK")
</pallas_src>

<mosaic_0001>
module attributes {stable_mosaic.version = 11 : i64} {
  func.func @rnn_resnet_kernel(%arg0: memref<8x64xbf16, #tpu.memory_space<vmem>>, %arg1: memref<320x128xbf16, #tpu.memory_space<vmem>>, %arg2: memref<4x128xf32, #tpu.memory_space<vmem>>, %arg3: memref<8x128xf32, #tpu.memory_space<vmem>>, %arg4: memref<8x128xf32, #tpu.memory_space<vmem>>, %arg5: memref<8x32xf32, #tpu.memory_space<vmem>>) attributes {dimension_semantics = [], scalar_prefetch = 0 : i64, scratch_operands = 2 : i64, tpu.core_type = #tpu.core_type<tc>} {
    %cst = arith.constant 0.000000e+00 : f32
    %0 = vector.broadcast %cst : f32 to vector<8x128xf32>
    %c0 = arith.constant 0 : index
    %c0_0 = arith.constant 0 : index
    %1 = vector.load %arg3[%c0, %c0_0] : memref<8x128xf32, #tpu.memory_space<vmem>>, vector<8x128xf32>
    tpu.vector_store %arg3[%c0, %c0_0], %0 {strides = array<i32>} : memref<8x128xf32, #tpu.memory_space<vmem>>, vector<8x128xf32>,
    %c0_1 = arith.constant 0 : index
    %c0_2 = arith.constant 0 : index
    %2 = vector.load %arg0[%c0_1, %c0_2] : memref<8x64xbf16, #tpu.memory_space<vmem>>, vector<8x64xbf16>
    %c0_3 = arith.constant 0 : index
    %c0_4 = arith.constant 0 : index
    %3 = vector.load %arg1[%c0_3, %c0_4] : memref<320x128xbf16, #tpu.memory_space<vmem>>, vector<64x128xbf16>
    %cst_5 = arith.constant dense<0.000000e+00> : vector<8x128xf32>
    %4 = tpu.matmul %2, %3, %cst_5 {dimension_numbers = #tpu.dot_dimension_numbers<[1], [0], [0], [1], [0, 0, 1, 1], [], []>} : vector<8x64xbf16>, vector<64x128xbf16>, vector<8x128xf32> -> vector<8x128xf32>
    %c0_6 = arith.constant 0 : index
    %c0_7 = arith.constant 0 : index
    %5 = vector.load %arg2[%c0_6, %c0_7] : memref<4x128xf32, #tpu.memory_space<vmem>>, vector<1x128xf32>
    %6 = vector.broadcast %5 : vector<1x128xf32> to vector<8x128xf32>
    %7 = arith.addf %4, %6 : vector<8x128xf32>
    %cst_8 = arith.constant 0.000000e+00 : f32
    %8 = vector.broadcast %cst_8 : f32 to vector<8x128xf32>
    %9 = arith.maximumf %7, %8 : vector<8x128xf32>
    %10 = arith.truncf %9 : vector<8x128xf32> to vector<8x128xbf16>
    %c64 = arith.constant 64 : index
    %c0_9 = arith.constant 0 : index
    %11 = vector.load %arg1[%c64, %c0_9] : memref<320x128xbf16, #tpu.memory_space<vmem>>, vector<128x128xbf16>
    %cst_10 = arith.constant dense<0.000000e+00> : vector<8x128xf32>
    %12 = tpu.matmul %10, %11, %cst_10 {dimension_numbers = #tpu.dot_dimension_numbers<[1], [0], [0], [1], [0, 0, 1, 1], [], []>} : vector<8x128xbf16>, vector<128x128xbf16>, vector<8x128xf32> -> vector<8x128xf32>
    %c1 = arith.constant 1 : index
    %c0_11 = arith.constant 0 : index
    %13 = vector.load %arg2[%c1, %c0_11] : memref<4x128xf32, #tpu.memory_space<vmem>>, vector<1x128xf32>
    %14 = vector.broadcast %13 : vector<1x128xf32> to vector<8x128xf32>
    %15 = arith.addf %12, %14 : vector<8x128xf32>
    %c0_12 = arith.constant 0 : index
    %c0_13 = arith.constant 0 : index
    %16 = vector.load %arg4[%c0_12, %c0_13] : memref<8x128xf32, #tpu.memory_space<vmem>>, vector<8x128xf32>
    tpu.vector_store %arg4[%c0_12, %c0_13], %15 {strides = array<i32>} : memref<8x128xf32, #tpu.memory_space<vmem>>, vector<8x128xf32>,
    %c224 = arith.constant 224 : index
    %c0_14 = arith.constant 0 : index
    %17 = vector.load %arg1[%c224, %c0_14] : memref<320x128xbf16, #tpu.memory_space<vmem>>, vector<32x128xbf16>
    %cst_15 = arith.constant 0.000000e+00 : f32
    %18 = vector.broadcast %cst_15 : f32 to vector<2x32xf32>
    %cst_16 = arith.constant 0.000000e+00 : f32
    %19 = vector.broadcast %cst_16 : f32 to vector<2x32xf32>
    %c0_17 = arith.constant 0 : index
    %c0_18 = arith.constant 0 : index
    %20 = vector.load %arg4[%c0_17, %c0_18] : memref<8x128xf32, #tpu.memory_space<vmem>>, vector<2x128xf32>
    %21 = arith.truncf %18 : vector<2x32xf32> to vector<2x32xbf16>
    %cst_19 = arith.constant dense<0.000000e+00> : vector<2x128xf32>
    %22 = tpu.matmul %21, %17, %cst_19 {dimension_numbers = #tpu.dot_dimension_numbers<[1], [0], [0], [1], [0, 0, 1, 1], [], []>} : vector<2x32xbf16>, vector<32x128xbf16>, vector<2x128xf32> -> vector<2x128xf32>
    %23 = arith.addf %20, %22 : vector<2x128xf32>
    %24 = arith.negf %23 : vector<2x128xf32>
    %25 = math.exp %24 : vector<2x128xf32>
    %cst_20 = arith.constant 1.000000e+00 : f32
    %26 = vector.broadcast %cst_20 : f32 to vector<2x128xf32>
    %27 = arith.addf %26, %25 : vector<2x128xf32>
    %28 = arith.divf %26, %27 : vector<2x128xf32>
    %29 = math.tanh %23 : vector<2x128xf32>
    %30 = vector.extract_strided_slice %28 {offsets = [0, 0], sizes = [2, 32], strides = [1, 1]} : vector<2x128xf32> to vector<2x32xf32>
    %31 = arith.mulf %30, %19 : vector<2x32xf32>
    %32 = vector.extract_strided_slice %28 {offsets = [0, 64], sizes = [2, 32], strides = [1, 1]} : vector<2x128xf32> to vector<2x32xf32>
    %33 = vector.extract_strided_slice %29 {offsets = [0, 96], sizes = [2, 32], strides = [1, 1]} : vector<2x128xf32> to vector<2x32xf32>
    %34 = arith.mulf %32, %33 : vector<2x32xf32>
    %35 = arith.addf %31, %34 : vector<2x32xf32>
    %36 = vector.extract_strided_slice %28 {offsets = [0, 32], sizes = [2, 32], strides = [1, 1]} : vector<2x128xf32> to vector<2x32xf32>
    %37 = math.tanh %35 : vector<2x32xf32>
    %38 = arith.mulf %36, %37 : vector<2x32xf32>
    %c0_21 = arith.constant 0 : index
    %c0_22 = arith.constant 0 : index
    %39 = vector.load %arg5[%c0_21, %c0_22] : memref<8x32xf32, #tpu.memory_space<vmem>>, vector<2x32xf32>
    tpu.vector_store %arg5[%c0_21, %c0_22], %38 {strides = array<i32>} : memref<8x32xf32, #tpu.memory_space<vmem>>, vector<2x32xf32>,
    %c2 = arith.constant 2 : index
    %c0_23 = arith.constant 0 : index
    %40 = vector.load %arg4[%c2, %c0_23] : memref<8x128xf32, #tpu.memory_space<vmem>>, vector<2x128xf32>
    %41 = arith.truncf %38 : vector<2x32xf32> to vector<2x32xbf16>
    %cst_24 = arith.constant dense<0.000000e+00> : vector<2x128xf32>
    %42 = tpu.matmul %41, %17, %cst_24 {dimension_numbers = #tpu.dot_dimension_numbers<[1], [0], [0], [1], [0, 0, 1, 1], [], []>} : vector<2x32xbf16>, vector<32x128xbf16>, vector<2x128xf32> -> vector<2x128xf32>
    %43 = arith.addf %40, %42 : vector<2x128xf32>
    %44 = arith.negf %43 : vector<2x128xf32>
    %45 = math.exp %44 : vector<2x128xf32>
    %cst_25 = arith.constant 1.000000e+00 : f32
    %46 = vector.broadcast %cst_25 : f32 to vector<2x128xf32>
    %47 = arith.addf %46, %45 : vector<2x128xf32>
    %48 = arith.divf %46, %47 : vector<2x128xf32>
    %49 = math.tanh %43 : vector<2x128xf32>
    %50 = vector.extract_strided_slice %48 {offsets = [0, 0], sizes = [2, 32], strides = [1, 1]} : vector<2x128xf32> to vector<2x32xf32>
    %51 = arith.mulf %50, %35 : vector<2x32xf32>
    %52 = vector.extract_strided_slice %48 {offsets = [0, 64], sizes = [2, 32], strides = [1, 1]} : vector<2x128xf32> to vector<2x32xf32>
    %53 = vector.extract_strided_slice %49 {offsets = [0, 96], sizes = [2, 32], strides = [1, 1]} : vector<2x128xf32> to vector<2x32xf32>
    %54 = arith.mulf %52, %53 : vector<2x32xf32>
    %55 = arith.addf %51, %54 : vector<2x32xf32>
    %56 = vector.extract_strided_slice %48 {offsets = [0, 32], sizes = [2, 32], strides = [1, 1]} : vector<2x128xf32> to vector<2x32xf32>
    %57 = math.tanh %55 : vector<2x32xf32>
    %58 = arith.mulf %56, %57 : vector<2x32xf32>
    %c2_26 = arith.constant 2 : index
    %c0_27 = arith.constant 0 : index
    %59 = vector.load %arg5[%c2_26, %c0_27] : memref<8x32xf32, #tpu.memory_space<vmem>>, vector<2x32xf32>
    tpu.vector_store %arg5[%c2_26, %c0_27], %58 {strides = array<i32>} : memref<8x32xf32, #tpu.memory_space<vmem>>, vector<2x32xf32>,
    %c4 = arith.constant 4 : index
    %c0_28 = arith.constant 0 : index
    %60 = vector.load %arg4[%c4, %c0_28] : memref<8x128xf32, #tpu.memory_space<vmem>>, vector<2x128xf32>
    %61 = arith.truncf %58 : vector<2x32xf32> to vector<2x32xbf16>
    %cst_29 = arith.constant dense<0.000000e+00> : vector<2x128xf32>
    %62 = tpu.matmul %61, %17, %cst_29 {dimension_numbers = #tpu.dot_dimension_numbers<[1], [0], [0], [1], [0, 0, 1, 1], [], []>} : vector<2x32xbf16>, vector<32x128xbf16>, vector<2x128xf32> -> vector<2x128xf32>
    %63 = arith.addf %60, %62 : vector<2x128xf32>
    %64 = arith.negf %63 : vector<2x128xf32>
    %65 = math.exp %64 : vector<2x128xf32>
    %cst_30 = arith.constant 1.000000e+00 : f32
    %66 = vector.broadcast %cst_30 : f32 to vector<2x128xf32>
    %67 = arith.addf %66, %65 : vector<2x128xf32>
    %68 = arith.divf %66, %67 : vector<2x128xf32>
    %69 = math.tanh %63 : vector<2x128xf32>
    %70 = vector.extract_strided_slice %68 {offsets = [0, 0], sizes = [2, 32], strides = [1, 1]} : vector<2x128xf32> to vector<2x32xf32>
    %71 = arith.mulf %70, %55 : vector<2x32xf32>
    %72 = vector.extract_strided_slice %68 {offsets = [0, 64], sizes = [2, 32], strides = [1, 1]} : vector<2x128xf32> to vector<2x32xf32>
    %73 = vector.extract_strided_slice %69 {offsets = [0, 96], sizes = [2, 32], strides = [1, 1]} : vector<2x128xf32> to vector<2x32xf32>
    %74 = arith.mulf %72, %73 : vector<2x32xf32>
    %75 = arith.addf %71, %74 : vector<2x32xf32>
    %76 = vector.extract_strided_slice %68 {offsets = [0, 32], sizes = [2, 32], strides = [1, 1]} : vector<2x128xf32> to vector<2x32xf32>
    %77 = math.tanh %75 : vector<2x32xf32>
    %78 = arith.mulf %76, %77 : vector<2x32xf32>
    %c4_31 = arith.constant 4 : index
    %c0_32 = arith.constant 0 : index
    %79 = vector.load %arg5[%c4_31, %c0_32] : memref<8x32xf32, #tpu.memory_space<vmem>>, vector<2x32xf32>
    tpu.vector_store %arg5[%c4_31, %c0_32], %78 {strides = array<i32>} : memref<8x32xf32, #tpu.memory_space<vmem>>, vector<2x32xf32>,
    %c6 = arith.constant 6 : index
    %c0_33 = arith.constant 0 : index
    %80 = vector.load %arg4[%c6, %c0_33] : memref<8x128xf32, #tpu.memory_space<vmem>>, vector<2x128xf32>
    %81 = arith.truncf %78 : vector<2x32xf32> to vector<2x32xbf16>
    %cst_34 = arith.constant dense<0.000000e+00> : vector<2x128xf32>
    %82 = tpu.matmul %81, %17, %cst_34 {dimension_numbers = #tpu.dot_dimension_numbers<[1], [0], [0], [1], [0, 0, 1, 1], [], []>} : vector<2x32xbf16>, vector<32x128xbf16>, vector<2x128xf32> -> vector<2x128xf32>
    %83 = arith.addf %80, %82 : vector<2x128xf32>
    %84 = arith.negf %83 : vector<2x128xf32>
    %85 = math.exp %84 : vector<2x128xf32>
    %cst_35 = arith.constant 1.000000e+00 : f32
    %86 = vector.broadcast %cst_35 : f32 to vector<2x128xf32>
    %87 = arith.addf %86, %85 : vector<2x128xf32>
    %88 = arith.divf %86, %87 : vector<2x128xf32>
    %89 = math.tanh %83 : vector<2x128xf32>
    %90 = vector.extract_strided_slice %88 {offsets = [0, 0], sizes = [2, 32], strides = [1, 1]} : vector<2x128xf32> to vector<2x32xf32>
    %91 = arith.mulf %90, %75 : vector<2x32xf32>
    %92 = vector.extract_strided_slice %88 {offsets = [0, 64], sizes = [2, 32], strides = [1, 1]} : vector<2x128xf32> to vector<2x32xf32>
    %93 = vector.extract_strided_slice %89 {offsets = [0, 96], sizes = [2, 32], strides = [1, 1]} : vector<2x128xf32> to vector<2x32xf32>
    %94 = arith.mulf %92, %93 : vector<2x32xf32>
    %95 = arith.addf %91, %94 : vector<2x32xf32>
    %96 = vector.extract_strided_slice %88 {offsets = [0, 32], sizes = [2, 32], strides = [1, 1]} : vector<2x128xf32> to vector<2x32xf32>
    %97 = math.tanh %95 : vector<2x32xf32>
    %98 = arith.mulf %96, %97 : vector<2x32xf32>
    %c6_36 = arith.constant 6 : index
    %c0_37 = arith.constant 0 : index
    %99 = vector.load %arg5[%c6_36, %c0_37] : memref<8x32xf32, #tpu.memory_space<vmem>>, vector<2x32xf32>
    tpu.vector_store %arg5[%c6_36, %c0_37], %98 {strides = array<i32>} : memref<8x32xf32, #tpu.memory_space<vmem>>, vector<2x32xf32>,
    %c2_38 = arith.constant 2 : index
    %c0_39 = arith.constant 0 : index
    %100 = vector.load %arg3[%c2_38, %c0_39] : memref<8x128xf32, #tpu.memory_space<vmem>>, vector<2x32xf32>
    tpu.vector_store %arg3[%c2_38, %c0_39], %98 {strides = array<i32>} : memref<8x128xf32, #tpu.memory_space<vmem>>, vector<2x32xf32>,
    %c2_40 = arith.constant 2 : index
    %c32 = arith.constant 32 : index
    %101 = vector.load %arg3[%c2_40, %c32] : memref<8x128xf32, #tpu.memory_space<vmem>>, vector<2x32xf32>
    tpu.vector_store %arg3[%c2_40, %c32], %95 {strides = array<i32>} : memref<8x128xf32, #tpu.memory_space<vmem>>, vector<2x32xf32>,
    %c192 = arith.constant 192 : index
    %c0_41 = arith.constant 0 : index
    %102 = vector.load %arg1[%c192, %c0_41] : memref<320x128xbf16, #tpu.memory_space<vmem>>, vector<32x128xbf16>
    %c0_42 = arith.constant 0 : index
    %c0_43 = arith.constant 0 : index
    %103 = vector.load %arg5[%c0_42, %c0_43] : memref<8x32xf32, #tpu.memory_space<vmem>>, vector<8x32xf32>
    %104 = arith.truncf %103 : vector<8x32xf32> to vector<8x32xbf16>
    %cst_44 = arith.constant dense<0.000000e+00> : vector<8x128xf32>
    %105 = tpu.matmul %104, %102, %cst_44 {dimension_numbers = #tpu.dot_dimension_numbers<[1], [0], [0], [1], [0, 0, 1, 1], [], []>} : vector<8x32xbf16>, vector<32x128xbf16>, vector<8x128xf32> -> vector<8x128xf32>
    %c2_45 = arith.constant 2 : index
    %c0_46 = arith.constant 0 : index
    %106 = vector.load %arg2[%c2_45, %c0_46] : memref<4x128xf32, #tpu.memory_space<vmem>>, vector<1x128xf32>
    %107 = vector.broadcast %106 : vector<1x128xf32> to vector<8x128xf32>
    %108 = arith.addf %105, %107 : vector<8x128xf32>
    %c0_47 = arith.constant 0 : index
    %c0_48 = arith.constant 0 : index
    %109 = vector.load %arg4[%c0_47, %c0_48] : memref<8x128xf32, #tpu.memory_space<vmem>>, vector<8x128xf32>
    tpu.vector_store %arg4[%c0_47, %c0_48], %108 {strides = array<i32>} : memref<8x128xf32, #tpu.memory_space<vmem>>, vector<8x128xf32>,
    %c256 = arith.constant 256 : index
    %c0_49 = arith.constant 0 : index
    %110 = vector.load %arg1[%c256, %c0_49] : memref<320x128xbf16, #tpu.memory_space<vmem>>, vector<32x128xbf16>
    %cst_50 = arith.constant 0.000000e+00 : f32
    %111 = vector.broadcast %cst_50 : f32 to vector<2x32xf32>
    %cst_51 = arith.constant 0.000000e+00 : f32
    %112 = vector.broadcast %cst_51 : f32 to vector<2x32xf32>
    %c0_52 = arith.constant 0 : index
    %c0_53 = arith.constant 0 : index
    %113 = vector.load %arg4[%c0_52, %c0_53] : memref<8x128xf32, #tpu.memory_space<vmem>>, vector<2x128xf32>
    %114 = arith.truncf %111 : vector<2x32xf32> to vector<2x32xbf16>
    %cst_54 = arith.constant dense<0.000000e+00> : vector<2x128xf32>
    %115 = tpu.matmul %114, %110, %cst_54 {dimension_numbers = #tpu.dot_dimension_numbers<[1], [0], [0], [1], [0, 0, 1, 1], [], []>} : vector<2x32xbf16>, vector<32x128xbf16>, vector<2x128xf32> -> vector<2x128xf32>
    %116 = arith.addf %113, %115 : vector<2x128xf32>
    %117 = arith.negf %116 : vector<2x128xf32>
    %118 = math.exp %117 : vector<2x128xf32>
    %cst_55 = arith.constant 1.000000e+00 : f32
    %119 = vector.broadcast %cst_55 : f32 to vector<2x128xf32>
    %120 = arith.addf %119, %118 : vector<2x128xf32>
    %121 = arith.divf %119, %120 : vector<2x128xf32>
    %122 = math.tanh %116 : vector<2x128xf32>
    %123 = vector.extract_strided_slice %121 {offsets = [0, 0], sizes = [2, 32], strides = [1, 1]} : vector<2x128xf32> to vector<2x32xf32>
    %124 = arith.mulf %123, %112 : vector<2x32xf32>
    %125 = vector.extract_strided_slice %121 {offsets = [0, 64], sizes = [2, 32], strides = [1, 1]} : vector<2x128xf32> to vector<2x32xf32>
    %126 = vector.extract_strided_slice %122 {offsets = [0, 96], sizes = [2, 32], strides = [1, 1]} : vector<2x128xf32> to vector<2x32xf32>
    %127 = arith.mulf %125, %126 : vector<2x32xf32>
    %128 = arith.addf %124, %127 : vector<2x32xf32>
    %129 = vector.extract_strided_slice %121 {offsets = [0, 32], sizes = [2, 32], strides = [1, 1]} : vector<2x128xf32> to vector<2x32xf32>
    %130 = math.tanh %128 : vector<2x32xf32>
    %131 = arith.mulf %129, %130 : vector<2x32xf32>
    %c0_56 = arith.constant 0 : index
    %c0_57 = arith.constant 0 : index
    %132 = vector.load %arg5[%c0_56, %c0_57] : memref<8x32xf32, #tpu.memory_space<vmem>>, vector<2x32xf32>
    tpu.vector_store %arg5[%c0_56, %c0_57], %131 {strides = array<i32>} : memref<8x32xf32, #tpu.memory_space<vmem>>, vector<2x32xf32>,
    %c2_58 = arith.constant 2 : index
    %c0_59 = arith.constant 0 : index
    %133 = vector.load %arg4[%c2_58, %c0_59] : memref<8x128xf32, #tpu.memory_space<vmem>>, vector<2x128xf32>
    %134 = arith.truncf %131 : vector<2x32xf32> to vector<2x32xbf16>
    %cst_60 = arith.constant dense<0.000000e+00> : vector<2x128xf32>
    %135 = tpu.matmul %134, %110, %cst_60 {dimension_numbers = #tpu.dot_dimension_numbers<[1], [0], [0], [1], [0, 0, 1, 1], [], []>} : vector<2x32xbf16>, vector<32x128xbf16>, vector<2x128xf32> -> vector<2x128xf32>
    %136 = arith.addf %133, %135 : vector<2x128xf32>
    %137 = arith.negf %136 : vector<2x128xf32>
    %138 = math.exp %137 : vector<2x128xf32>
    %cst_61 = arith.constant 1.000000e+00 : f32
    %139 = vector.broadcast %cst_61 : f32 to vector<2x128xf32>
    %140 = arith.addf %139, %138 : vector<2x128xf32>
    %141 = arith.divf %139, %140 : vector<2x128xf32>
    %142 = math.tanh %136 : vector<2x128xf32>
    %143 = vector.extract_strided_slice %141 {offsets = [0, 0], sizes = [2, 32], strides = [1, 1]} : vector<2x128xf32> to vector<2x32xf32>
    %144 = arith.mulf %143, %128 : vector<2x32xf32>
    %145 = vector.extract_strided_slice %141 {offsets = [0, 64], sizes = [2, 32], strides = [1, 1]} : vector<2x128xf32> to vector<2x32xf32>
    %146 = vector.extract_strided_slice %142 {offsets = [0, 96], sizes = [2, 32], strides = [1, 1]} : vector<2x128xf32> to vector<2x32xf32>
    %147 = arith.mulf %145, %146 : vector<2x32xf32>
    %148 = arith.addf %144, %147 : vector<2x32xf32>
    %149 = vector.extract_strided_slice %141 {offsets = [0, 32], sizes = [2, 32], strides = [1, 1]} : vector<2x128xf32> to vector<2x32xf32>
    %150 = math.tanh %148 : vector<2x32xf32>
    %151 = arith.mulf %149, %150 : vector<2x32xf32>
    %c2_62 = arith.constant 2 : index
    %c0_63 = arith.constant 0 : index
    %152 = vector.load %arg5[%c2_62, %c0_63] : memref<8x32xf32, #tpu.memory_space<vmem>>, vector<2x32xf32>
    tpu.vector_store %arg5[%c2_62, %c0_63], %151 {strides = array<i32>} : memref<8x32xf32, #tpu.memory_space<vmem>>, vector<2x32xf32>,
    %c4_64 = arith.constant 4 : index
    %c0_65 = arith.constant 0 : index
    %153 = vector.load %arg4[%c4_64, %c0_65] : memref<8x128xf32, #tpu.memory_space<vmem>>, vector<2x128xf32>
    %154 = arith.truncf %151 : vector<2x32xf32> to vector<2x32xbf16>
    %cst_66 = arith.constant dense<0.000000e+00> : vector<2x128xf32>
    %155 = tpu.matmul %154, %110, %cst_66 {dimension_numbers = #tpu.dot_dimension_numbers<[1], [0], [0], [1], [0, 0, 1, 1], [], []>} : vector<2x32xbf16>, vector<32x128xbf16>, vector<2x128xf32> -> vector<2x128xf32>
    %156 = arith.addf %153, %155 : vector<2x128xf32>
    %157 = arith.negf %156 : vector<2x128xf32>
    %158 = math.exp %157 : vector<2x128xf32>
    %cst_67 = arith.constant 1.000000e+00 : f32
    %159 = vector.broadcast %cst_67 : f32 to vector<2x128xf32>
    %160 = arith.addf %159, %158 : vector<2x128xf32>
    %161 = arith.divf %159, %160 : vector<2x128xf32>
    %162 = math.tanh %156 : vector<2x128xf32>
    %163 = vector.extract_strided_slice %161 {offsets = [0, 0], sizes = [2, 32], strides = [1, 1]} : vector<2x128xf32> to vector<2x32xf32>
    %164 = arith.mulf %163, %148 : vector<2x32xf32>
    %165 = vector.extract_strided_slice %161 {offsets = [0, 64], sizes = [2, 32], strides = [1, 1]} : vector<2x128xf32> to vector<2x32xf32>
    %166 = vector.extract_strided_slice %162 {offsets = [0, 96], sizes = [2, 32], strides = [1, 1]} : vector<2x128xf32> to vector<2x32xf32>
    %167 = arith.mulf %165, %166 : vector<2x32xf32>
    %168 = arith.addf %164, %167 : vector<2x32xf32>
    %169 = vector.extract_strided_slice %161 {offsets = [0, 32], sizes = [2, 32], strides = [1, 1]} : vector<2x128xf32> to vector<2x32xf32>
    %170 = math.tanh %168 : vector<2x32xf32>
    %171 = arith.mulf %169, %170 : vector<2x32xf32>
    %c4_68 = arith.constant 4 : index
    %c0_69 = arith.constant 0 : index
    %172 = vector.load %arg5[%c4_68, %c0_69] : memref<8x32xf32, #tpu.memory_space<vmem>>, vector<2x32xf32>
    tpu.vector_store %arg5[%c4_68, %c0_69], %171 {strides = array<i32>} : memref<8x32xf32, #tpu.memory_space<vmem>>, vector<2x32xf32>,
    %c6_70 = arith.constant 6 : index
    %c0_71 = arith.constant 0 : index
    %173 = vector.load %arg4[%c6_70, %c0_71] : memref<8x128xf32, #tpu.memory_space<vmem>>, vector<2x128xf32>
    %174 = arith.truncf %171 : vector<2x32xf32> to vector<2x32xbf16>
    %cst_72 = arith.constant dense<0.000000e+00> : vector<2x128xf32>
    %175 = tpu.matmul %174, %110, %cst_72 {dimension_numbers = #tpu.dot_dimension_numbers<[1], [0], [0], [1], [0, 0, 1, 1], [], []>} : vector<2x32xbf16>, vector<32x128xbf16>, vector<2x128xf32> -> vector<2x128xf32>
    %176 = arith.addf %173, %175 : vector<2x128xf32>
    %177 = arith.negf %176 : vector<2x128xf32>
    %178 = math.exp %177 : vector<2x128xf32>
    %cst_73 = arith.constant 1.000000e+00 : f32
    %179 = vector.broadcast %cst_73 : f32 to vector<2x128xf32>
    %180 = arith.addf %179, %178 : vector<2x128xf32>
    %181 = arith.divf %179, %180 : vector<2x128xf32>
    %182 = math.tanh %176 : vector<2x128xf32>
    %183 = vector.extract_strided_slice %181 {offsets = [0, 0], sizes = [2, 32], strides = [1, 1]} : vector<2x128xf32> to vector<2x32xf32>
    %184 = arith.mulf %183, %168 : vector<2x32xf32>
    %185 = vector.extract_strided_slice %181 {offsets = [0, 64], sizes = [2, 32], strides = [1, 1]} : vector<2x128xf32> to vector<2x32xf32>
    %186 = vector.extract_strided_slice %182 {offsets = [0, 96], sizes = [2, 32], strides = [1, 1]} : vector<2x128xf32> to vector<2x32xf32>
    %187 = arith.mulf %185, %186 : vector<2x32xf32>
    %188 = arith.addf %184, %187 : vector<2x32xf32>
    %189 = vector.extract_strided_slice %181 {offsets = [0, 32], sizes = [2, 32], strides = [1, 1]} : vector<2x128xf32> to vector<2x32xf32>
    %190 = math.tanh %188 : vector<2x32xf32>
    %191 = arith.mulf %189, %190 : vector<2x32xf32>
    %c6_74 = arith.constant 6 : index
    %c0_75 = arith.constant 0 : index
    %192 = vector.load %arg5[%c6_74, %c0_75] : memref<8x32xf32, #tpu.memory_space<vmem>>, vector<2x32xf32>
    tpu.vector_store %arg5[%c6_74, %c0_75], %191 {strides = array<i32>} : memref<8x32xf32, #tpu.memory_space<vmem>>, vector<2x32xf32>,
    %c4_76 = arith.constant 4 : index
    %c0_77 = arith.constant 0 : index
    %193 = vector.load %arg3[%c4_76, %c0_77] : memref<8x128xf32, #tpu.memory_space<vmem>>, vector<2x32xf32>
    tpu.vector_store %arg3[%c4_76, %c0_77], %191 {strides = array<i32>} : memref<8x128xf32, #tpu.memory_space<vmem>>, vector<2x32xf32>,
    %c4_78 = arith.constant 4 : index
    %c32_79 = arith.constant 32 : index
    %194 = vector.load %arg3[%c4_78, %c32_79] : memref<8x128xf32, #tpu.memory_space<vmem>>, vector<2x32xf32>
    tpu.vector_store %arg3[%c4_78, %c32_79], %188 {strides = array<i32>} : memref<8x128xf32, #tpu.memory_space<vmem>>, vector<2x32xf32>,
    %195 = arith.truncf %191 : vector<2x32xf32> to vector<2x32xbf16>
    %c288 = arith.constant 288 : index
    %c0_80 = arith.constant 0 : index
    %196 = vector.load %arg1[%c288, %c0_80] : memref<320x128xbf16, #tpu.memory_space<vmem>>, vector<32x128xbf16>
    %cst_81 = arith.constant dense<0.000000e+00> : vector<2x128xf32>
    %197 = tpu.matmul %195, %196, %cst_81 {dimension_numbers = #tpu.dot_dimension_numbers<[1], [0], [0], [1], [0, 0, 1, 1], [], []>} : vector<2x32xbf16>, vector<32x128xbf16>, vector<2x128xf32> -> vector<2x128xf32>
    %c3 = arith.constant 3 : index
    %c0_82 = arith.constant 0 : index
    %198 = vector.load %arg2[%c3, %c0_82] : memref<4x128xf32, #tpu.memory_space<vmem>>, vector<1x128xf32>
    %199 = vector.broadcast %198 : vector<1x128xf32> to vector<2x128xf32>
    %200 = arith.addf %197, %199 : vector<2x128xf32>
    %c0_83 = arith.constant 0 : index
    %c0_84 = arith.constant 0 : index
    %201 = vector.load %arg3[%c0_83, %c0_84] : memref<8x128xf32, #tpu.memory_space<vmem>>, vector<2x128xf32>
    tpu.vector_store %arg3[%c0_83, %c0_84], %200 {strides = array<i32>} : memref<8x128xf32, #tpu.memory_space<vmem>>, vector<2x128xf32>,
    return
  }
}

</mosaic_0001>

<llo_original>
// kernel: squeeze.1
$region0: #{squeeze.1}
  %s0 = inlined_call_operand.vmem [shape: bf16[2,64], index: 0, kind: input, shape index: {}]
  %s1 = inlined_call_operand.vmem [shape: bf16[2,4,16], index: 1, kind: output, shape index: {}]
  $region1: #{squeeze.1} parent=0
    #allocation0 [shape = 'u8[8192]{0}', space=vmem, size = 0x2000, scoped, tag = 'scoped mem for output reshape']
    #allocation1 [shape = 'u8[4096]{0}', space=vmem, size = 0x1000, scoped, tag = 'scoped mem for input reshape']
    %s3 = ssub.s32 4, 1
    %s4 = sshrl.u32 %s3, 1
    %s5 = sor.u32 %s3, %s4
    %s6 = sand.u32 %s5, 85
    %s7 = sshrl.u32 %s6, 1
    %s8 = sor.u32 %s6, %s7
    %s9 = sand.u32 51, %s8
    %s10 = sshrl.u32 %s9, 2
    %s11 = sor.u32 %s9, %s10
    %s12 = sand.u32 15, %s11
    %v13 = vld [vmem:[%s0] sm:%s12]
    %v14 = vunpack.c.l.bf16 %v13
    %v15 = vunpack.c.h.bf16 %v13
    %16 = vst [vmem:[#allocation1] sm:%s3] %v14
    %v17 = vld [vmem:[#allocation1] sm:$0x3]
    %vm18 = vcmask 130048
    %19 = vst.msk [vmem:[#allocation0] ss:$8 sm:$0x3] %vm18, %v17
    %v20 = vld [vmem:[#allocation1] sm:$0x3]
    %21 = vrot.lane.b32.xlu0 %v20, 112
    %v22 = vpop.permute.xlu0 %21
    %vm23 = vcmask 130048
    %s24 = scalar_lea.vmem [#allocation0], 1
    %25 = vst.msk [vmem:[%s24] ss:$8 sm:$0x3] %vm23, %v22
    %v26 = vld [vmem:[#allocation1] sm:$0x3]
    %27 = vrot.lane.b32.xlu0 %v26, 96
    %v28 = vpop.permute.xlu0 %27
    %vm29 = vcmask 130048
    %s30 = scalar_lea.vmem [#allocation0], 2
    %31 = vst.msk [vmem:[%s30] ss:$8 sm:$0x3] %vm29, %v28
    %v32 = vld [vmem:[#allocation1] sm:$0x3]
    %33 = vrot.lane.b32.xlu0 %v32, 80
    %v34 = vpop.permute.xlu0 %33
    %vm35 = vcmask 130048
    %s36 = scalar_lea.vmem [#allocation0], 3
    %37 = vst.msk [vmem:[%s36] ss:$8 sm:$0x3] %vm35, %v34
    %s39 = ssub.s32 16, 1
    %v40 = vld [vmem:[#allocation0] sm:%s39]
    %v41 = vpack.c.bf16 0.0, %v40
    %s43 = ssub.s32 4, 1
    %44 = vst [vmem:[%s1] sm:%s43] %v41
    %s45 = scalar_lea.vmem [#allocation0], 8
    %v46 = vld [vmem:[%s45] sm:%s39]
    %v47 = vpack.c.bf16 0.0, %v46
    %s49 = ssub.s32 4, 1
    %s50 = scalar_lea.vmem %s1, 2
    %51 = vst [vmem:[%s50] sm:%s49] %v47

// kernel: rnn_resnet_forward.1
$region0: #{rnn_resnet_forward.1}
  #allocation0 [shape = 'u32[]', space=smem, size = 0x4, offset = 0x4, fixed_abs, tag = 'smem constant byte address 0x4 - core index']
  #allocation1 [shape = 'u32[72,128]{1,0:T(1,128)}', space=vmem, size = 0x9000, scoped, tag = 'internal scratch']
  #allocation2 [shape = 'f32[8,128]{1,0:T(8,128)}', space=vmem, size = 0x1000, scoped, tag = 'scratch operand']
  #allocation3 [shape = 'f32[8,32]{1,0:T(8,128)}', space=vmem, size = 0x1000, scoped, tag = 'scratch operand']
  %s0 = inlined_call_operand.vmem [shape: bf16[8,64], index: 0, kind: input, shape index: {}]
  %s1 = inlined_call_operand.vmem [shape: bf16[320,128], index: 1, kind: input, shape index: {}]
  %s2 = inlined_call_operand.vmem [shape: f32[4,128], index: 2, kind: input, shape index: {}]
  %s3 = inlined_call_operand.vmem [shape: f32[8,128], index: 3, kind: output, shape index: {}]
  %s4 = sld [smem:[#allocation0]]
  $region22: #{rnn_resnet_forward.1} parent=0
    _
  %s6 = ssub.s32 1, %s4
  %s7 = scalar_select 0, %s6, %s4
  // Predicated region
  $region2: #{rnn_resnet_forward.1} parent=0 // pred_check
    _
  $region3: #{rnn_resnet_forward.1} parent=0 // pred_check_branch
    %9 = sbr.rel (0) target = $region5
  $region4: #{rnn_resnet_forward.1} parent=0 // pred_region
    _
  $region5: #{rnn_resnet_forward.1} parent=0 // pred_fallthru
    _
  // Predicated region
  $region6: #{rnn_resnet_forward.1} parent=0 // pred_check
    _
  $region7: #{rnn_resnet_forward.1} parent=0 // pred_check_branch
    %11 = sbr.rel (0) target = $region9
  $region8: #{rnn_resnet_forward.1} parent=0 // pred_region
    _
  $region9: #{rnn_resnet_forward.1} parent=0 // pred_fallthru
    _
  // Predicated region
  $region10: #{rnn_resnet_forward.1} parent=0 // pred_check
    _
  $region11: #{rnn_resnet_forward.1} parent=0 // pred_check_branch
    %13 = sbr.rel (0) target = $region13
  $region12: #{rnn_resnet_forward.1} parent=0 // pred_region
    _
  $region13: #{rnn_resnet_forward.1} parent=0 // pred_fallthru
    _
  %15 = vst [vmem:[%s3] sm:$0xff] 0.0
  %v16 = vld [vmem:[%s0] sm:$0xf]
  %v17 = vld [vmem:[%s1] sm:$0xf]
  %v18 = vld [vmem:[%s1 + $0x4] sm:$0xf]
  %v19 = vld [vmem:[%s1 + $0x8] sm:$0xf]
  %v20 = vld [vmem:[%s1 + $0xc] sm:$0xf]
  %v21 = vld [vmem:[%s1 + $0x10] sm:$0xf]
  %v22 = vld [vmem:[%s1 + $0x14] sm:$0xf]
  %v23 = vld [vmem:[%s1 + $0x18] sm:$0xf]
  %v24 = vld [vmem:[%s1 + $0x1c] sm:$0xf]
  %v25 = vld [vmem:[%s2] sm:$0x1]
  %v26 = vperm.slane %v25, 0
  %v35 = vunpack.c.l.b16 %v17
  %v36 = vunpack.c.l.b16 %v18
  %v37 = vunpack.c.l.b16 %v19
  %v38 = vunpack.c.l.b16 %v20
  %v39 = vunpack.c.l.b16 %v21
  %v40 = vunpack.c.l.b16 %v22
  %v41 = vunpack.c.l.b16 %v23
  %v42 = vunpack.c.l.b16 %v24
  %v43 = vpack.c.b16 %v36, %v35
  %v44 = vpack.c.b16 %v38, %v37
  %v45 = vpack.c.b16 %v40, %v39
  %v46 = vpack.c.b16 %v42, %v41
  %vm51 = vcmask 523264
  %v53 = vsel %vm51, %v16, 0
  %55 = vmatpush.bf16.msra.mxu0 0
  %56 = vmatpush.bf16.msra.mxu0 0
  %57 = vmatpush.bf16.msra.mxu0 0
  %58 = vmatpush.bf16.msra.mxu0 0
  %59 = vmatpush.bf16.msra.mxu0 %v46
  %60 = vmatpush.bf16.msra.mxu0 %v45
  %61 = vmatpush.bf16.msra.mxu0 %v44
  %62 = vmatpush.bf16.msra.mxu0 %v43
  %63 = vmatmul.bf16.gmra.mxu0 %v53
  %v64 = vpop.f32.mrf.mxu0
  %v65 = vadd.f32 %v26, %v64
  %v66 = vpop.f32.mrf.mxu0
  %67 = vdwg.mxu0
  %v68 = vmax.f32 %v65, 0.0
  %v69 = vpack.c.bf16 %v68, %v68
  %v70 = vld [vmem:[%s1 + $0x20] sm:$0xf]
  %v71 = vld [vmem:[%s1 + $0x24] sm:$0xf]
  %v72 = vld [vmem:[%s1 + $0x28] sm:$0xf]
  %v73 = vld [vmem:[%s1 + $0x2c] sm:$0xf]
  %v74 = vld [vmem:[%s1 + $0x30] sm:$0xf]
  %v75 = vld [vmem:[%s1 + $0x34] sm:$0xf]
  %v76 = vld [vmem:[%s1 + $0x38] sm:$0xf]
  %v77 = vld [vmem:[%s1 + $0x3c] sm:$0xf]
  %v78 = vld [vmem:[%s1 + $0x40] sm:$0xf]
  %v79 = vld [vmem:[%s1 + $0x44] sm:$0xf]
  %v80 = vld [vmem:[%s1 + $0x48] sm:$0xf]
  %v81 = vld [vmem:[%s1 + $0x4c] sm:$0xf]
  %v82 = vld [vmem:[%s1 + $0x50] sm:$0xf]
  %v83 = vld [vmem:[%s1 + $0x54] sm:$0xf]
  %v84 = vld [vmem:[%s1 + $0x58] sm:$0xf]
  %v85 = vld [vmem:[%s1 + $0x5c] sm:$0xf]
  %v86 = vld [vmem:[%s2 + $0x1] sm:$0x1]
  %v87 = vperm.slane %v86, 0
  %v104 = vunpack.c.l.b16 %v70
  %v105 = vunpack.c.l.b16 %v71
  %v106 = vunpack.c.l.b16 %v72
  %v107 = vunpack.c.l.b16 %v73
  %v108 = vunpack.c.l.b16 %v74
  %v109 = vunpack.c.l.b16 %v75
  %v110 = vunpack.c.l.b16 %v76
  %v111 = vunpack.c.l.b16 %v77
  %v112 = vunpack.c.l.b16 %v78
  %v113 = vunpack.c.l.b16 %v79
  %v114 = vunpack.c.l.b16 %v80
  %v115 = vunpack.c.l.b16 %v81
  %v116 = vunpack.c.l.b16 %v82
  %v117 = vunpack.c.l.b16 %v83
  %v118 = vunpack.c.l.b16 %v84
  %v119 = vunpack.c.l.b16 %v85
  %v120 = vpack.c.b16 %v105, %v104
  %v121 = vpack.c.b16 %v107, %v106
  %v122 = vpack.c.b16 %v109, %v108
  %v123 = vpack.c.b16 %v111, %v110
  %v124 = vpack.c.b16 %v113, %v112
  %v125 = vpack.c.b16 %v115, %v114
  %v126 = vpack.c.b16 %v117, %v116
  %v127 = vpack.c.b16 %v119, %v118
  %136 = vmatpush.bf16.msra.mxu0 %v127
  %137 = vmatpush.bf16.msra.mxu0 %v126
  %138 = vmatpush.bf16.msra.mxu0 %v125
  %139 = vmatpush.bf16.msra.mxu0 %v124
  %140 = vmatpush.bf16.msra.mxu0 %v123
  %141 = vmatpush.bf16.msra.mxu0 %v122
  %142 = vmatpush.bf16.msra.mxu0 %v121
  %143 = vmatpush.bf16.msra.mxu0 %v120
  %144 = vmatmul.bf16.gmra.mxu0 %v69
  %v145 = vpop.f32.mrf.mxu0
  %v146 = vadd.f32 %v87, %v145
  %v147 = vpop.f32.mrf.mxu0
  %148 = vdwg.mxu0
  %149 = vst [vmem:[#allocation2] sm:$0xff] %v146
  %v150 = vld [vmem:[%s1 + $0x70] sm:$0xf]
  %v151 = vld [vmem:[%s1 + $0x74] sm:$0xf]
  %v152 = vld [vmem:[%s1 + $0x78] sm:$0xf]
  %v153 = vld [vmem:[%s1 + $0x7c] sm:$0xf]
  %v154 = vld [vmem:[#allocation2] sm:$0x3]
  %v159 = vunpack.c.l.b16 %v150
  %v160 = vunpack.c.l.b16 %v151
  %v161 = vunpack.c.l.b16 %v152
  %v162 = vunpack.c.l.b16 %v153
  %v163 = vpack.c.b16 %v160, %v159
  %v164 = vpack.c.b16 %v162, %v161
  %vm167 = vcmask 261120
  %v169 = vsel %vm167, 0, 0
  %171 = vmatpush.bf16.msra.mxu0 0
  %172 = vmatpush.bf16.msra.mxu0 0
  %173 = vmatpush.bf16.msra.mxu0 0
  %174 = vmatpush.bf16.msra.mxu0 0
  %175 = vmatpush.bf16.msra.mxu0 0
  %176 = vmatpush.bf16.msra.mxu0 0
  %177 = vmatpush.bf16.msra.mxu0 %v164
  %178 = vmatpush.bf16.msra.mxu0 %v163
  %179 = vmatmul.bf16.gmra.mxu0 %v169
  %v180 = vpop.f32.mrf.mxu0
  %v181 = vadd.f32 0.0, %v180
  %v182 = vpop.f32.mrf.mxu0
  %183 = vdwg.mxu0
  %v184 = vadd.f32 %v154, %v181
  %v185 = vxor.u32 %v184, 2147483648
  %v186 = vmul.f32 %v185, 1.442695
  %v187 = vpow.pop %v186
  %v188 = vadd.f32 %v187, 1.0
  %v189 = vrcp.pop %v188
  %v190 = vmul.f32 %v188, %v189
  %v191 = vsub.f32 1.0, %v190
  %v192 = vmul.f32 %v189, %v191
  %v193 = vadd.f32 %v189, %v192
  %vm194 = vweird.f32 %v188
  %vm195 = vweird.f32 %v189
  %vm196 = vmor %vm194, %vm195
  %v197 = vsel %vm196, %v189, %v193
  %v198 = vand.u32 2147483647, %v188
  %vm199 = vcmp.eq.f32.partialorder %v198, 8.507059e+37
  %v200 = vand.u32 %v188, 2147483648
  %v201 = vor.u32 1.1754944e-38, %v200
  %v202 = vsel %vm199, %v201, %v197
  %v203 = vmul.f32 1.0, %v202
  %v204 = vtanh.pop %v184
  %v205 = vmul.f32 %v203, 0.0
  %207 = vrot.lane.b32.xlu0 %v204, 96
  %v208 = vpop.permute.xlu0 %207
  %v210 = vmul.f32 %v203, %v208
  %212 = vrot.lane.b32.xlu0 %v210, 64
  %v213 = vpop.permute.xlu0 %212
  %v215 = vadd.f32 %v205, %v213
  %v216 = vtanh.pop %v215
  %218 = vrot.lane.b32.xlu0 %v216, 32
  %v219 = vpop.permute.xlu0 %218
  %v221 = vmul.f32 %v203, %v219
  %223 = vrot.lane.b32.xlu0 %v221, 96
  %v224 = vpop.permute.xlu0 %223
  %vm226 = vcmask 254976
  %227 = vst.msk [vmem:[#allocation3] sm:$0x3] %vm226, %v224
  %v228 = vld [vmem:[#allocation2 + $0x2] sm:$0x3]
  %v229 = vpack.c.bf16 %v221, %v221
  %231 = vrot.lane.b32.xlu0 %v229, 96
  %v232 = vpop.permute.xlu0 %231
  %v234 = vsel %vm167, %v232, 0
  %236 = vmatpush.bf16.msra.mxu0 0
  %237 = vmatpush.bf16.msra.mxu0 0
  %238 = vmatpush.bf16.msra.mxu0 0
  %239 = vmatpush.bf16.msra.mxu0 0
  %240 = vmatpush.bf16.msra.mxu0 0
  %241 = vmatpush.bf16.msra.mxu0 0
  %242 = vmatpush.bf16.msra.mxu0 %v164
  %243 = vmatpush.bf16.msra.mxu0 %v163
  %244 = vmatmul.bf16.gmra.mxu0 %v234
  %v245 = vpop.f32.mrf.mxu0
  %v246 = vadd.f32 0.0, %v245
  %v247 = vpop.f32.mrf.mxu0
  %248 = vdwg.mxu0
  %v249 = vadd.f32 %v228, %v246
  %v250 = vxor.u32 %v249, 2147483648
  %v251 = vmul.f32 %v250, 1.442695
  %v252 = vpow.pop %v251
  %v253 = vadd.f32 %v252, 1.0
  %v254 = vrcp.pop %v253
  %v255 = vmul.f32 %v253, %v254
  %v256 = vsub.f32 1.0, %v255
  %v257 = vmul.f32 %v254, %v256
  %v258 = vadd.f32 %v254, %v257
  %vm259 = vweird.f32 %v253
  %vm260 = vweird.f32 %v254
  %vm261 = vmor %vm259, %vm260
  %v262 = vsel %vm261, %v254, %v258
  %v263 = vand.u32 2147483647, %v253
  %vm264 = vcmp.eq.f32.partialorder %v263, 8.507059e+37
  %v265 = vand.u32 %v253, 2147483648
  %v266 = vor.u32 1.1754944e-38, %v265
  %v267 = vsel %vm264, %v266, %v262
  %v268 = vmul.f32 1.0, %v267
  %v269 = vtanh.pop %v249
  %v270 = vmul.f32 %v268, %v215
  %272 = vrot.lane.b32.xlu0 %v269, 96
  %v273 = vpop.permute.xlu0 %272
  %v275 = vmul.f32 %v268, %v273
  %277 = vrot.lane.b32.xlu0 %v275, 64
  %v278 = vpop.permute.xlu0 %277
  %v280 = vadd.f32 %v270, %v278
  %v281 = vtanh.pop %v280
  %283 = vrot.lane.b32.xlu0 %v281, 32
  %v284 = vpop.permute.xlu0 %283
  %v286 = vmul.f32 %v268, %v284
  %288 = vrot.lane.b32.xlu0 %v286, 96
  %v289 = vpop.permute.xlu0 %288
  %291 = vst.msk [vmem:[#allocation3 + $0x2] sm:$0x3] %vm226, %v289
  %v292 = vld [vmem:[#allocation2 + $0x4] sm:$0x3]
  %v293 = vpack.c.bf16 %v286, %v286
  %295 = vrot.lane.b32.xlu0 %v293, 96
  %v296 = vpop.permute.xlu0 %295
  %v298 = vsel %vm167, %v296, 0
  %300 = vmatpush.bf16.msra.mxu0 0
  %301 = vmatpush.bf16.msra.mxu0 0
  %302 = vmatpush.bf16.msra.mxu0 0
  %303 = vmatpush.bf16.msra.mxu0 0
  %304 = vmatpush.bf16.msra.mxu0 0
  %305 = vmatpush.bf16.msra.mxu0 0
  %306 = vmatpush.bf16.msra.mxu0 %v164
  %307 = vmatpush.bf16.msra.mxu0 %v163
  %308 = vmatmul.bf16.gmra.mxu0 %v298
  %v309 = vpop.f32.mrf.mxu0
  %v310 = vadd.f32 0.0, %v309
  %v311 = vpop.f32.mrf.mxu0
  %312 = vdwg.mxu0
  %v313 = vadd.f32 %v292, %v310
  %v314 = vxor.u32 %v313, 2147483648
  %v315 = vmul.f32 %v314, 1.442695
  %v316 = vpow.pop %v315
  %v317 = vadd.f32 %v316, 1.0
  %v318 = vrcp.pop %v317
  %v319 = vmul.f32 %v317, %v318
  %v320 = vsub.f32 1.0, %v319
  %v321 = vmul.f32 %v318, %v320
  %v322 = vadd.f32 %v318, %v321
  %vm323 = vweird.f32 %v317
  %vm324 = vweird.f32 %v318
  %vm325 = vmor %vm323, %vm324
  %v326 = vsel %vm325, %v318, %v322
  %v327 = vand.u32 2147483647, %v317
  %vm328 = vcmp.eq.f32.partialorder %v327, 8.507059e+37
  %v329 = vand.u32 %v317, 2147483648
  %v330 = vor.u32 1.1754944e-38, %v329
  %v331 = vsel %vm328, %v330, %v326
  %v332 = vmul.f32 1.0, %v331
  %v333 = vtanh.pop %v313
  %v334 = vmul.f32 %v332, %v280
  %336 = vrot.lane.b32.xlu0 %v333, 96
  %v337 = vpop.permute.xlu0 %336
  %v339 = vmul.f32 %v332, %v337
  %341 = vrot.lane.b32.xlu0 %v339, 64
  %v342 = vpop.permute.xlu0 %341
  %v344 = vadd.f32 %v334, %v342
  %v345 = vtanh.pop %v344
  %347 = vrot.lane.b32.xlu0 %v345, 32
  %v348 = vpop.permute.xlu0 %347
  %v350 = vmul.f32 %v332, %v348
  %352 = vrot.lane.b32.xlu0 %v350, 96
  %v353 = vpop.permute.xlu0 %352
  %355 = vst.msk [vmem:[#allocation3 + $0x4] sm:$0x3] %vm226, %v353
  %v356 = vld [vmem:[#allocation2 + $0x6] sm:$0x3]
  %v357 = vpack.c.bf16 %v350, %v350
  %359 = vrot.lane.b32.xlu0 %v357, 96
  %v360 = vpop.permute.xlu0 %359
  %v362 = vsel %vm167, %v360, 0
  %364 = vmatpush.bf16.msra.mxu0 0
  %365 = vmatpush.bf16.msra.mxu0 0
  %366 = vmatpush.bf16.msra.mxu0 0
  %367 = vmatpush.bf16.msra.mxu0 0
  %368 = vmatpush.bf16.msra.mxu0 0
  %369 = vmatpush.bf16.msra.mxu0 0
  %370 = vmatpush.bf16.msra.mxu0 %v164
  %371 = vmatpush.bf16.msra.mxu0 %v163
  %372 = vmatmul.bf16.gmra.mxu0 %v362
  %v373 = vpop.f32.mrf.mxu0
  %v374 = vadd.f32 0.0, %v373
  %v375 = vpop.f32.mrf.mxu0
  %376 = vdwg.mxu0
  %v377 = vadd.f32 %v356, %v374
  %v378 = vxor.u32 %v377, 2147483648
  %v379 = vmul.f32 %v378, 1.442695
  %v380 = vpow.pop %v379
  %v381 = vadd.f32 %v380, 1.0
  %v382 = vrcp.pop %v381
  %v383 = vmul.f32 %v381, %v382
  %v384 = vsub.f32 1.0, %v383
  %v385 = vmul.f32 %v382, %v384
  %v386 = vadd.f32 %v382, %v385
  %vm387 = vweird.f32 %v381
  %vm388 = vweird.f32 %v382
  %vm389 = vmor %vm387, %vm388
  %v390 = vsel %vm389, %v382, %v386
  %v391 = vand.u32 2147483647, %v381
  %vm392 = vcmp.eq.f32.partialorder %v391, 8.507059e+37
  %v393 = vand.u32 %v381, 2147483648
  %v394 = vor.u32 1.1754944e-38, %v393
  %v395 = vsel %vm392, %v394, %v390
  %v396 = vmul.f32 1.0, %v395
  %v397 = vtanh.pop %v377
  %v398 = vmul.f32 %v396, %v344
  %400 = vrot.lane.b32.xlu0 %v397, 96
  %v401 = vpop.permute.xlu0 %400
  %v403 = vmul.f32 %v396, %v401
  %405 = vrot.lane.b32.xlu0 %v403, 64
  %v406 = vpop.permute.xlu0 %405
  %v408 = vadd.f32 %v398, %v406
  %v409 = vtanh.pop %v408
  %411 = vrot.lane.b32.xlu0 %v409, 32
  %v412 = vpop.permute.xlu0 %411
  %v414 = vmul.f32 %v396, %v412
  %416 = vrot.lane.b32.xlu0 %v414, 96
  %v417 = vpop.permute.xlu0 %416
  %419 = vst.msk [vmem:[#allocation3 + $0x6] sm:$0x3] %vm226, %v417
  %420 = vst.msk [vmem:[%s3 + $0x2] sm:$0x3] %vm226, %v417
  %422 = vrot.lane.b32.xlu0 %v408, 32
  %v423 = vpop.permute.xlu0 %422
  %vm425 = vcmask 517376
  %426 = vst.msk [vmem:[%s3 + $0x2] sm:$0x3] %vm425, %v423
  %v427 = vld [vmem:[%s1 + $0x60] sm:$0xf]
  %v428 = vld [vmem:[%s1 + $0x64] sm:$0xf]
  %v429 = vld [vmem:[%s1 + $0x68] sm:$0xf]
  %v430 = vld [vmem:[%s1 + $0x6c] sm:$0xf]
  %v431 = vld [vmem:[#allocation3] sm:$0xff]
  %v432 = vpack.c.bf16 %v431, %v431
  %v433 = vld [vmem:[%s2 + $0x2] sm:$0x1]
  %v434 = vperm.slane %v433, 0
  %v439 = vunpack.c.l.b16 %v427
  %v440 = vunpack.c.l.b16 %v428
  %v441 = vunpack.c.l.b16 %v429
  %v442 = vunpack.c.l.b16 %v430
  %v443 = vpack.c.b16 %v440, %v439
  %v444 = vpack.c.b16 %v442, %v441
  %v448 = vsel %vm167, %v432, 0
  %450 = vmatpush.bf16.msra.mxu0 0
  %451 = vmatpush.bf16.msra.mxu0 0
  %452 = vmatpush.bf16.msra.mxu0 0
  %453 = vmatpush.bf16.msra.mxu0 0
  %454 = vmatpush.bf16.msra.mxu0 0
  %455 = vmatpush.bf16.msra.mxu0 0
  %456 = vmatpush.bf16.msra.mxu0 %v444
  %457 = vmatpush.bf16.msra.mxu0 %v443
  %458 = vmatmul.bf16.gmra.mxu0 %v448
  %v459 = vpop.f32.mrf.mxu0
  %v460 = vadd.f32 %v434, %v459
  %v461 = vpop.f32.mrf.mxu0
  %462 = vdwg.mxu0
  %463 = vst [vmem:[#allocation2] sm:$0xff] %v460
  %v464 = vld [vmem:[%s1 + $0x80] sm:$0xf]
  %v465 = vld [vmem:[%s1 + $0x84] sm:$0xf]
  %v466 = vld [vmem:[%s1 + $0x88] sm:$0xf]
  %v467 = vld [vmem:[%s1 + $0x8c] sm:$0xf]
  %v468 = vld [vmem:[#allocation2] sm:$0x3]
  %v473 = vunpack.c.l.b16 %v464
  %v474 = vunpack.c.l.b16 %v465
  %v475 = vunpack.c.l.b16 %v466
  %v476 = vunpack.c.l.b16 %v467
  %v477 = vpack.c.b16 %v474, %v473
  %v478 = vpack.c.b16 %v476, %v475
  %481 = vmatpush.bf16.msra.mxu0 0
  %482 = vmatpush.bf16.msra.mxu0 0
  %483 = vmatpush.bf16.msra.mxu0 0
  %484 = vmatpush.bf16.msra.mxu0 0
  %485 = vmatpush.bf16.msra.mxu0 0
  %486 = vmatpush.bf16.msra.mxu0 0
  %487 = vmatpush.bf16.msra.mxu0 %v478
  %488 = vmatpush.bf16.msra.mxu0 %v477
  %489 = vmatmul.bf16.gmra.mxu0 %v169
  %v490 = vpop.f32.mrf.mxu0
  %v491 = vadd.f32 0.0, %v490
  %v492 = vpop.f32.mrf.mxu0
  %493 = vdwg.mxu0
  %v494 = vadd.f32 %v468, %v491
  %v495 = vxor.u32 %v494, 2147483648
  %v496 = vmul.f32 %v495, 1.442695
  %v497 = vpow.pop %v496
  %v498 = vadd.f32 %v497, 1.0
  %v499 = vrcp.pop %v498
  %v500 = vmul.f32 %v498, %v499
  %v501 = vsub.f32 1.0, %v500
  %v502 = vmul.f32 %v499, %v501
  %v503 = vadd.f32 %v499, %v502
  %vm504 = vweird.f32 %v498
  %vm505 = vweird.f32 %v499
  %vm506 = vmor %vm504, %vm505
  %v507 = vsel %vm506, %v499, %v503
  %v508 = vand.u32 2147483647, %v498
  %vm509 = vcmp.eq.f32.partialorder %v508, 8.507059e+37
  %v510 = vand.u32 %v498, 2147483648
  %v511 = vor.u32 1.1754944e-38, %v510
  %v512 = vsel %vm509, %v511, %v507
  %v513 = vmul.f32 1.0, %v512
  %v514 = vtanh.pop %v494
  %v515 = vmul.f32 %v513, 0.0
  %517 = vrot.lane.b32.xlu0 %v514, 96
  %v518 = vpop.permute.xlu0 %517
  %v520 = vmul.f32 %v513, %v518
  %522 = vrot.lane.b32.xlu0 %v520, 64
  %v523 = vpop.permute.xlu0 %522
  %v525 = vadd.f32 %v515, %v523
  %v526 = vtanh.pop %v525
  %528 = vrot.lane.b32.xlu0 %v526, 32
  %v529 = vpop.permute.xlu0 %528
  %v531 = vmul.f32 %v513, %v529
  %533 = vrot.lane.b32.xlu0 %v531, 96
  %v534 = vpop.permute.xlu0 %533
  %536 = vst.msk [vmem:[#allocation3] sm:$0x3] %vm226, %v534
  %v537 = vld [vmem:[#allocation2 + $0x2] sm:$0x3]
  %v538 = vpack.c.bf16 %v531, %v531
  %540 = vrot.lane.b32.xlu0 %v538, 96
  %v541 = vpop.permute.xlu0 %540
  %v543 = vsel %vm167, %v541, 0
  %545 = vmatpush.bf16.msra.mxu0 0
  %546 = vmatpush.bf16.msra.mxu0 0
  %547 = vmatpush.bf16.msra.mxu0 0
  %548 = vmatpush.bf16.msra.mxu0 0
  %549 = vmatpush.bf16.msra.mxu0 0
  %550 = vmatpush.bf16.msra.mxu0 0
  %551 = vmatpush.bf16.msra.mxu0 %v478
  %552 = vmatpush.bf16.msra.mxu0 %v477
  %553 = vmatmul.bf16.gmra.mxu0 %v543
  %v554 = vpop.f32.mrf.mxu0
  %v555 = vadd.f32 0.0, %v554
  %v556 = vpop.f32.mrf.mxu0
  %557 = vdwg.mxu0
  %v558 = vadd.f32 %v537, %v555
  %v559 = vxor.u32 %v558, 2147483648
  %v560 = vmul.f32 %v559, 1.442695
  %v561 = vpow.pop %v560
  %v562 = vadd.f32 %v561, 1.0
  %v563 = vrcp.pop %v562
  %v564 = vmul.f32 %v562, %v563
  %v565 = vsub.f32 1.0, %v564
  %v566 = vmul.f32 %v563, %v565
  %v567 = vadd.f32 %v563, %v566
  %vm568 = vweird.f32 %v562
  %vm569 = vweird.f32 %v563
  %vm570 = vmor %vm568, %vm569
  %v571 = vsel %vm570, %v563, %v567
  %v572 = vand.u32 2147483647, %v562
  %vm573 = vcmp.eq.f32.partialorder %v572, 8.507059e+37
  %v574 = vand.u32 %v562, 2147483648
  %v575 = vor.u32 1.1754944e-38, %v574
  %v576 = vsel %vm573, %v575, %v571
  %v577 = vmul.f32 1.0, %v576
  %v578 = vtanh.pop %v558
  %v579 = vmul.f32 %v577, %v525
  %581 = vrot.lane.b32.xlu0 %v578, 96
  %v582 = vpop.permute.xlu0 %581
  %v584 = vmul.f32 %v577, %v582
  %586 = vrot.lane.b32.xlu0 %v584, 64
  %v587 = vpop.permute.xlu0 %586
  %v589 = vadd.f32 %v579, %v587
  %v590 = vtanh.pop %v589
  %592 = vrot.lane.b32.xlu0 %v590, 32
  %v593 = vpop.permute.xlu0 %592
  %v595 = vmul.f32 %v577, %v593
  %597 = vrot.lane.b32.xlu0 %v595, 96
  %v598 = vpop.permute.xlu0 %597
  %600 = vst.msk [vmem:[#allocation3 + $0x2] sm:$0x3] %vm226, %v598
  %v601 = vld [vmem:[#allocation2 + $0x4] sm:$0x3]
  %v602 = vpack.c.bf16 %v595, %v595
  %604 = vrot.lane.b32.xlu0 %v602, 96
  %v605 = vpop.permute.xlu0 %604
  %v607 = vsel %vm167, %v605, 0
  %609 = vmatpush.bf16.msra.mxu0 0
  %610 = vmatpush.bf16.msra.mxu0 0
  %611 = vmatpush.bf16.msra.mxu0 0
  %612 = vmatpush.bf16.msra.mxu0 0
  %613 = vmatpush.bf16.msra.mxu0 0
  %614 = vmatpush.bf16.msra.mxu0 0
  %615 = vmatpush.bf16.msra.mxu0 %v478
  %616 = vmatpush.bf16.msra.mxu0 %v477
  %617 = vmatmul.bf16.gmra.mxu0 %v607
  %v618 = vpop.f32.mrf.mxu0
  %v619 = vadd.f32 0.0, %v618
  %v620 = vpop.f32.mrf.mxu0
  %621 = vdwg.mxu0
  %v622 = vadd.f32 %v601, %v619
  %v623 = vxor.u32 %v622, 2147483648
  %v624 = vmul.f32 %v623, 1.442695
  %v625 = vpow.pop %v624
  %v626 = vadd.f32 %v625, 1.0
  %v627 = vrcp.pop %v626
  %v628 = vmul.f32 %v626, %v627
  %v629 = vsub.f32 1.0, %v628
  %v630 = vmul.f32 %v627, %v629
  %v631 = vadd.f32 %v627, %v630
  %vm632 = vweird.f32 %v626
  %vm633 = vweird.f32 %v627
  %vm634 = vmor %vm632, %vm633
  %v635 = vsel %vm634, %v627, %v631
  %v636 = vand.u32 2147483647, %v626
  %vm637 = vcmp.eq.f32.partialorder %v636, 8.507059e+37
  %v638 = vand.u32 %v626, 2147483648
  %v639 = vor.u32 1.1754944e-38, %v638
  %v640 = vsel %vm637, %v639, %v635
  %v641 = vmul.f32 1.0, %v640
  %v642 = vtanh.pop %v622
  %v643 = vmul.f32 %v641, %v589
  %645 = vrot.lane.b32.xlu0 %v642, 96
  %v646 = vpop.permute.xlu0 %645
  %v648 = vmul.f32 %v641, %v646
  %650 = vrot.lane.b32.xlu0 %v648, 64
  %v651 = vpop.permute.xlu0 %650
  %v653 = vadd.f32 %v643, %v651
  %v654 = vtanh.pop %v653
  %656 = vrot.lane.b32.xlu0 %v654, 32
  %v657 = vpop.permute.xlu0 %656
  %v659 = vmul.f32 %v641, %v657
  %661 = vrot.lane.b32.xlu0 %v659, 96
  %v662 = vpop.permute.xlu0 %661
  %664 = vst.msk [vmem:[#allocation3 + $0x4] sm:$0x3] %vm226, %v662
  %v665 = vld [vmem:[#allocation2 + $0x6] sm:$0x3]
  %v666 = vpack.c.bf16 %v659, %v659
  %668 = vrot.lane.b32.xlu0 %v666, 96
  %v669 = vpop.permute.xlu0 %668
  %v671 = vsel %vm167, %v669, 0
  %673 = vmatpush.bf16.msra.mxu0 0
  %674 = vmatpush.bf16.msra.mxu0 0
  %675 = vmatpush.bf16.msra.mxu0 0
  %676 = vmatpush.bf16.msra.mxu0 0
  %677 = vmatpush.bf16.msra.mxu0 0
  %678 = vmatpush.bf16.msra.mxu0 0
  %679 = vmatpush.bf16.msra.mxu0 %v478
  %680 = vmatpush.bf16.msra.mxu0 %v477
  %681 = vmatmul.bf16.gmra.mxu0 %v671
  %v682 = vpop.f32.mrf.mxu0
  %v683 = vadd.f32 0.0, %v682
  %v684 = vpop.f32.mrf.mxu0
  %685 = vdwg.mxu0
  %v686 = vadd.f32 %v665, %v683
  %v687 = vxor.u32 %v686, 2147483648
  %v688 = vmul.f32 %v687, 1.442695
  %v689 = vpow.pop %v688
  %v690 = vadd.f32 %v689, 1.0
  %v691 = vrcp.pop %v690
  %v692 = vmul.f32 %v690, %v691
  %v693 = vsub.f32 1.0, %v692
  %v694 = vmul.f32 %v691, %v693
  %v695 = vadd.f32 %v691, %v694
  %vm696 = vweird.f32 %v690
  %vm697 = vweird.f32 %v691
  %vm698 = vmor %vm696, %vm697
  %v699 = vsel %vm698, %v691, %v695
  %v700 = vand.u32 2147483647, %v690
  %vm701 = vcmp.eq.f32.partialorder %v700, 8.507059e+37
  %v702 = vand.u32 %v690, 2147483648
  %v703 = vor.u32 1.1754944e-38, %v702
  %v704 = vsel %vm701, %v703, %v699
  %v705 = vmul.f32 1.0, %v704
  %v706 = vtanh.pop %v686
  %v707 = vmul.f32 %v705, %v653
  %709 = vrot.lane.b32.xlu0 %v706, 96
  %v710 = vpop.permute.xlu0 %709
  %v712 = vmul.f32 %v705, %v710
  %714 = vrot.lane.b32.xlu0 %v712, 64
  %v715 = vpop.permute.xlu0 %714
  %v717 = vadd.f32 %v707, %v715
  %v718 = vtanh.pop %v717
  %720 = vrot.lane.b32.xlu0 %v718, 32
  %v721 = vpop.permute.xlu0 %720
  %v723 = vmul.f32 %v705, %v721
  %725 = vrot.lane.b32.xlu0 %v723, 96
  %v726 = vpop.permute.xlu0 %725
  %728 = vst.msk [vmem:[#allocation3 + $0x6] sm:$0x3] %vm226, %v726
  %729 = vst.msk [vmem:[%s3 + $0x4] sm:$0x3] %vm226, %v726
  %731 = vrot.lane.b32.xlu0 %v717, 32
  %v732 = vpop.permute.xlu0 %731
  %734 = vst.msk [vmem:[%s3 + $0x4] sm:$0x3] %vm425, %v732
  %v735 = vpack.c.bf16 %v723, %v723
  %v736 = vld [vmem:[%s1 + $0x90] sm:$0xf]
  %v737 = vld [vmem:[%s1 + $0x94] sm:$0xf]
  %v738 = vld [vmem:[%s1 + $0x98] sm:$0xf]
  %v739 = vld [vmem:[%s1 + $0x9c] sm:$0xf]
  %v740 = vld [vmem:[%s2 + $0x3] sm:$0x1]
  %v741 = vperm.slane %v740, 0
  %743 = vrot.lane.b32.xlu0 %v735, 96
  %v744 = vpop.permute.xlu0 %743
  %v749 = vunpack.c.l.b16 %v736
  %v750 = vunpack.c.l.b16 %v737
  %v751 = vunpack.c.l.b16 %v738
  %v752 = vunpack.c.l.b16 %v739
  %v753 = vpack.c.b16 %v750, %v749
  %v754 = vpack.c.b16 %v752, %v751
  %v758 = vsel %vm167, %v744, 0
  %760 = vmatpush.bf16.msra.mxu0 0
  %761 = vmatpush.bf16.msra.mxu0 0
  %762 = vmatpush.bf16.msra.mxu0 0
  %763 = vmatpush.bf16.msra.mxu0 0
  %764 = vmatpush.bf16.msra.mxu0 0
  %765 = vmatpush.bf16.msra.mxu0 0
  %766 = vmatpush.bf16.msra.mxu0 %v754
  %767 = vmatpush.bf16.msra.mxu0 %v753
  %768 = vmatmul.bf16.gmra.mxu0 %v758
  %v769 = vpop.f32.mrf.mxu0
  %v770 = vadd.f32 %v741, %v769
  %v771 = vpop.f32.mrf.mxu0
  %772 = vdwg.mxu0
  %773 = vst [vmem:[%s3] sm:$0x3] %v770
  // Predicated region
  $region14: #{rnn_resnet_forward.1} parent=0 // pred_check
    _
  $region15: #{rnn_resnet_forward.1} parent=0 // pred_check_branch
    %775 = sbr.rel (0) target = $region17
  $region16: #{rnn_resnet_forward.1} parent=0 // pred_region
    _
  $region17: #{rnn_resnet_forward.1} parent=0 // pred_fallthru
    _
  // Predicated region
  $region18: #{rnn_resnet_forward.1} parent=0 // pred_check
    _
  $region19: #{rnn_resnet_forward.1} parent=0 // pred_check_branch
    %777 = sbr.rel (0) target = $region21
  $region20: #{rnn_resnet_forward.1} parent=0 // pred_region
    _
  $region21: #{rnn_resnet_forward.1} parent=0 // pred_fallthru
    _

</llo_original>
